<compile_context>
chip_gen: v7x
topology: tpu7x:2x2x1
jax: 0.10.0
libtpu: 0.0.40
codegen_flags: <defaults>
</compile_context>

<pallas_src>
import functools

import jax
import jax.numpy as jnp
import numpy as np
from jax import lax
from jax.experimental import pallas as pl
from jax.experimental.pallas import tpu as pltpu

_LANE = 128
_MAX_TILE_ELEMS = 1 << 20        # <= ~4 MiB f32 of x per tile (also caps unrolled code size)
_TARGET_TILE_ELEMS = 512 * 1024  # used only to pick the row-tile size


def _waveform_loss_kernel(base_ref, x_ref, o_ref, acc_ref, *,
                          n_true, inv_n, tn, n_chunks, nk_per, n_par, mask_needed):
    s = pl.program_id(0)                      # column-split index (v7x dual core)
    k = pl.program_id(2)                      # column-tile index within the split

    @pl.when(k == 0)
    def _init():
        acc_ref[...] = jnp.zeros_like(acc_ref)

    if mask_needed:
        lane = lax.broadcasted_iota(jnp.int32, (1, _LANE), 1)
        # number of valid columns remaining in this (logical) tile
        lim = n_true - (s * nk_per + k) * tn

    # Chunk-at-a-time accumulation: each 128-lane chunk is loaded, cast,
    # squared-diff'ed and folded into one of `n_par` register partials — no
    # full-tile f32 temporaries, no per-chunk VMEM round trips.
    parts = [None] * n_par
    for c in range(n_chunks):
        xc = x_ref[:, c * _LANE:(c + 1) * _LANE].astype(jnp.float32)
        bc = base_ref[:, c * _LANE:(c + 1) * _LANE].astype(jnp.float32)   # (1,128) broadcasts
        d = bc - xc
        d2 = d * d
        if mask_needed:
            d2 = jnp.where(lane < (lim - c * _LANE), d2, 0.0)
        j = c % n_par
        parts[j] = d2 if parts[j] is None else parts[j] + d2

    total = parts[0]
    for p in parts[1:]:
        if p is not None:
            total = total + p
    acc_ref[...] += total

    @pl.when(k == pl.num_programs(2) - 1)
    def _finalize():
        row_sum = jnp.sum(acc_ref[...], axis=-1, keepdims=True)   # single XLU reduce
        o_ref[...] = (row_sum * inv_n).astype(o_ref.dtype)[None]


def waveform_loss(x: jax.Array, base_audio: jax.Array) -> jax.Array:
    """Pallas implementation of WaveformLoss.forward (mean over last axis)."""
    bshape = jnp.broadcast_shapes(x.shape, base_audio.shape)
    if len(bshape) == 0:
        raise ValueError("rank-0 inputs not supported")
    N = int(bshape[-1])
    lead = tuple(int(d) for d in bshape[:-1])
    B = int(np.prod(lead)) if lead else 1
    out_dtype = jnp.result_type(x.dtype, base_audio.dtype)

    # ---- canonicalise operands to 2-D [rows, N] (glue, no HBM copies in the
    # common cases) ----
    x_aligned = (1,) * (len(bshape) - x.ndim) + tuple(x.shape)
    if x_aligned == tuple(bshape):
        x2 = x.reshape(B, N)
    else:
        x2 = jnp.broadcast_to(x, bshape).reshape(B, N)

    ba_aligned = (1,) * (len(bshape) - base_audio.ndim) + tuple(base_audio.shape)
    if ba_aligned[-1] == N and all(d == 1 for d in ba_aligned[:-1]):
        base2 = base_audio.reshape(1, N)      # keep un-broadcast: (1, N)
        base_rows = 1
    elif ba_aligned == tuple(bshape):
        base2 = base_audio.reshape(B, N)
        base_rows = B
    else:
        # Mixed partial broadcast: materialise once (rare path).
        base2 = jnp.broadcast_to(base_audio, bshape).reshape(B, N)
        base_rows = B

    # ---- generation-aware VMEM budget ----
    try:
        vmem_cap = int(pltpu.get_tpu_info().vmem_capacity_bytes)
    except Exception:
        vmem_cap = 64 * 1024 * 1024           # conservative (v7x-sized) fallback
    if vmem_cap >= 100 * 1024 * 1024:         # v5e / v6e: 128 MiB VMEM
        input_budget = 40 * 1024 * 1024
    else:                                     # v7x: 64 MiB VMEM
        input_budget = 12 * 1024 * 1024
    vmem_limit = int(min(vmem_cap // 2, 64 * 1024 * 1024))

    xi = jnp.dtype(x2.dtype).itemsize
    bi = jnp.dtype(base2.dtype).itemsize

    # ---- row tile ----
    n_lane_chunks = int(pl.cdiv(N, _LANE))
    cols_cap = min(n_lane_chunks, _MAX_TILE_ELEMS // _LANE) * _LANE
    desired_rows = max(1, _TARGET_TILE_ELEMS // max(cols_cap, _LANE))
    if B <= max(64, desired_rows):
        tb = B                                # whole batch in one row block
    else:
        tb = max(64, min(256, (desired_rows // 8) * 8))
    nb = int(pl.cdiv(B, tb))                  # ragged last row block: no pad, rows
                                              # past B only touch discarded outputs
    base_tb = 1 if base_rows == 1 else tb

    # ---- column tile: budget- and code-size-capped, cdiv gridding (no
    # divisor search, no jnp.pad) ----
    budget_chunks = max(1, input_budget // (2 * _LANE * (tb * xi + base_tb * bi)))
    elems_chunks = max(1, _MAX_TILE_ELEMS // (tb * _LANE))
    n_chunks = int(max(1, min(n_lane_chunks, budget_chunks, elems_chunks)))
    tn = n_chunks * _LANE
    nk_total = int(pl.cdiv(N, tn))

    # If there is a single row block and a single column tile, halve the tile
    # so the column reduction can be split across two TensorCores (v7x).
    if nb == 1 and nk_total == 1 and n_chunks > 1:
        n_chunks = int(pl.cdiv(n_chunks, 2))
        tn = n_chunks * _LANE
        nk_total = int(pl.cdiv(N, tn))

    ns = 2 if (nb == 1 and nk_total >= 2) else 1
    nk_per = int(pl.cdiv(nk_total, ns))
    # mask iff the covered column range (incl. split phantom tiles) exceeds N
    mask_needed = (ns * nk_per * tn) != N

    # Independent partial accumulators to break the VALU dependency chain when
    # the row tile is skinny (few sublanes per vreg).
    n_par = int(min(max(1, 16 // max(tb, 1)), 8, n_chunks))

    kernel = functools.partial(
        _waveform_loss_kernel,
        n_true=N, inv_n=np.float32(1.0 / N), tn=tn, n_chunks=n_chunks,
        nk_per=nk_per, n_par=n_par, mask_needed=mask_needed)

    last_blk = nk_total - 1

    def col_blk(s, k):
        # clamp so split-induced phantom tiles re-read the last real block
        # (their contribution is fully masked / skipped in the kernel)
        return jnp.minimum(s * nk_per + k, last_blk)

    x_spec = pl.BlockSpec((tb, tn), lambda s, i, k: (i, col_blk(s, k)))
    if base_rows == 1:
        base_spec = pl.BlockSpec((1, tn), lambda s, i, k: (0, col_blk(s, k)))
    else:
        base_spec = pl.BlockSpec((tb, tn), lambda s, i, k: (i, col_blk(s, k)))
    out_spec = pl.BlockSpec((1, tb, 1), lambda s, i, k: (s, i, 0))

    out3 = pl.pallas_call(
        kernel,
        out_shape=jax.ShapeDtypeStruct((ns, B, 1), jnp.float32),
        grid_spec=pltpu.PrefetchScalarGridSpec(
            num_scalar_prefetch=0,
            grid=(ns, nb, nk_per),
            in_specs=[base_spec, x_spec],
            out_specs=out_spec,
            scratch_shapes=[pltpu.VMEM((tb, _LANE), jnp.float32)]),
        compiler_params=pltpu.CompilerParams(
            dimension_semantics=("parallel", "parallel", "arbitrary"),
            vmem_limit_bytes=vmem_limit),
    )(base2, x2)

    # TODO(synk): per-lane f32 running sums can drift slightly vs torch's
    # reduction order for N in the millions; acceptable for a loss.
    res = out3.sum(axis=0)[:, 0]              # add the per-split partial means
    return res.reshape(lead).astype(out_dtype)


if __name__ == "__main__":
    key = jax.random.PRNGKey(0)
    k1, k2, k3 = jax.random.split(key, 3)

    # Case 1: base_audio has the same shape as x.
    B, N = 4, 1024
    base_audio = jax.random.normal(k1, (B, N), dtype=jnp.float32)
    x = jax.random.normal(k2, (B, N), dtype=jnp.float32)
    out = jax.block_until_ready(waveform_loss(x, base_audio))
    ref = jnp.mean((base_audio - x) ** 2, axis=-1)
    np.testing.assert_allclose(np.asarray(out), np.asarray(ref), rtol=1e-5, atol=1e-5)

    # Case 2: 1-D base_audio broadcast against [B, N] x (BlockSpec-level
    # broadcast, no materialised HBM copy).
    base_1d = base_audio[0]
    out_b = jax.block_until_ready(waveform_loss(x, base_1d))
    ref_b = jnp.mean((base_1d - x) ** 2, axis=-1)
    np.testing.assert_allclose(np.asarray(out_b), np.asarray(ref_b), rtol=1e-5, atol=1e-5)

    # Case 3: ragged waveform length (N % 128 != 0), multi-dim batch, broadcast
    # base — exercises the in-kernel tail mask and the column split path.
    xr = jax.random.normal(k3, (2, 3, 500), dtype=jnp.float32)
    base_r = jax.random.normal(k1, (500,), dtype=jnp.float32)
    out_r = jax.block_until_ready(waveform_loss(xr, base_r))
    ref_r = jnp.mean((base_r - xr) ** 2, axis=-1)
    np.testing.assert_allclose(np.asarray(out_r), np.asarray(ref_r), rtol=1e-5, atol=1e-5)

    print("KERNEL_OK")
</pallas_src>

<mosaic_0001>
module attributes {stable_mosaic.version = 11 : i64} {
  func.func @_waveform_loss_kernel(%arg0: i32, %arg1: i32, %arg2: i32, %arg3: memref<4x512xf32, #tpu.memory_space<vmem>>, %arg4: memref<4x512xf32, #tpu.memory_space<vmem>>, %arg5: memref<1x4x1xf32, #tpu.memory_space<vmem>>, %arg6: memref<4x128xf32, #tpu.memory_space<vmem>>) attributes {dimension_semantics = [#tpu.dimension_semantics<parallel>, #tpu.dimension_semantics<parallel>, #tpu.dimension_semantics<arbitrary>], iteration_bounds = array<i64: 2, 1, 1>, scalar_prefetch = 0 : i64, scratch_operands = 1 : i64, tpu.core_type = #tpu.core_type<tc>, window_params = [{transform_indices = @transform_0, window_bounds = array<i64: 4, 512>}, {transform_indices = @transform_1, window_bounds = array<i64: 4, 512>}, {transform_indices = @transform_2, window_bounds = array<i64: 1, 4, 1>}]} {
    %c0_i32 = arith.constant 0 : i32
    %0 = arith.cmpi eq, %arg2, %c0_i32 : i32
    %1 = arith.extui %0 : i1 to i32
    %c0_i32_0 = arith.constant 0 : i32
    %2 = arith.cmpi ne, %1, %c0_i32_0 : i32
    scf.if %2 {
      %cst = arith.constant 0.000000e+00 : f32
      %28 = vector.broadcast %cst : f32 to vector<4x128xf32>
      %c0_19 = arith.constant 0 : index
      %c0_20 = arith.constant 0 : index
      %29 = vector.load %arg6[%c0_19, %c0_20] : memref<4x128xf32, #tpu.memory_space<vmem>>, vector<4x128xf32>
      tpu.vector_store %arg6[%c0_19, %c0_20], %28 {strides = array<i32>} : memref<4x128xf32, #tpu.memory_space<vmem>>, vector<4x128xf32>,
    } else {
    }
    %c0 = arith.constant 0 : index
    %c0_1 = arith.constant 0 : index
    %3 = vector.load %arg4[%c0, %c0_1] : memref<4x512xf32, #tpu.memory_space<vmem>>, vector<4x128xf32>
    %c0_2 = arith.constant 0 : index
    %c0_3 = arith.constant 0 : index
    %4 = vector.load %arg3[%c0_2, %c0_3] : memref<4x512xf32, #tpu.memory_space<vmem>>, vector<4x128xf32>
    %5 = arith.subf %4, %3 : vector<4x128xf32>
    %6 = arith.mulf %5, %5 : vector<4x128xf32>
    %c0_4 = arith.constant 0 : index
    %c128 = arith.constant 128 : index
    %7 = vector.load %arg4[%c0_4, %c128] : memref<4x512xf32, #tpu.memory_space<vmem>>, vector<4x128xf32>
    %c0_5 = arith.constant 0 : index
    %c128_6 = arith.constant 128 : index
    %8 = vector.load %arg3[%c0_5, %c128_6] : memref<4x512xf32, #tpu.memory_space<vmem>>, vector<4x128xf32>
    %9 = arith.subf %8, %7 : vector<4x128xf32>
    %10 = arith.mulf %9, %9 : vector<4x128xf32>
    %c0_7 = arith.constant 0 : index
    %c256 = arith.constant 256 : index
    %11 = vector.load %arg4[%c0_7, %c256] : memref<4x512xf32, #tpu.memory_space<vmem>>, vector<4x128xf32>
    %c0_8 = arith.constant 0 : index
    %c256_9 = arith.constant 256 : index
    %12 = vector.load %arg3[%c0_8, %c256_9] : memref<4x512xf32, #tpu.memory_space<vmem>>, vector<4x128xf32>
    %13 = arith.subf %12, %11 : vector<4x128xf32>
    %14 = arith.mulf %13, %13 : vector<4x128xf32>
    %c0_10 = arith.constant 0 : index
    %c384 = arith.constant 384 : index
    %15 = vector.load %arg4[%c0_10, %c384] : memref<4x512xf32, #tpu.memory_space<vmem>>, vector<4x128xf32>
    %c0_11 = arith.constant 0 : index
    %c384_12 = arith.constant 384 : index
    %16 = vector.load %arg3[%c0_11, %c384_12] : memref<4x512xf32, #tpu.memory_space<vmem>>, vector<4x128xf32>
    %17 = arith.subf %16, %15 : vector<4x128xf32>
    %18 = arith.mulf %17, %17 : vector<4x128xf32>
    %19 = arith.addf %6, %10 : vector<4x128xf32>
    %20 = arith.addf %19, %14 : vector<4x128xf32>
    %21 = arith.addf %20, %18 : vector<4x128xf32>
    %c0_13 = arith.constant 0 : index
    %c0_14 = arith.constant 0 : index
    %22 = vector.load %arg6[%c0_13, %c0_14] : memref<4x128xf32, #tpu.memory_space<vmem>>, vector<4x128xf32>
    %23 = arith.addf %22, %21 : vector<4x128xf32>
    %c0_15 = arith.constant 0 : index
    %c0_16 = arith.constant 0 : index
    %24 = vector.load %arg6[%c0_15, %c0_16] : memref<4x128xf32, #tpu.memory_space<vmem>>, vector<4x128xf32>
    tpu.vector_store %arg6[%c0_15, %c0_16], %23 {strides = array<i32>} : memref<4x128xf32, #tpu.memory_space<vmem>>, vector<4x128xf32>,
    %c0_i32_17 = arith.constant 0 : i32
    %25 = arith.cmpi eq, %arg2, %c0_i32_17 : i32
    %26 = arith.extui %25 : i1 to i32
    %c0_i32_18 = arith.constant 0 : i32
    %27 = arith.cmpi ne, %26, %c0_i32_18 : i32
    scf.if %27 {
      %c0_19 = arith.constant 0 : index
      %c0_20 = arith.constant 0 : index
      %28 = vector.load %arg6[%c0_19, %c0_20] : memref<4x128xf32, #tpu.memory_space<vmem>>, vector<4x128xf32>
      %cst = arith.constant dense<0.000000e+00> : vector<4xf32>
      %29 = vector.multi_reduction <add>, %28, %cst [1] : vector<4x128xf32> to vector<4xf32>
      %30 = vector.shape_cast %29 : vector<4xf32> to vector<4x1xf32>
      %cst_21 = arith.constant 9.765625E-4 : f32
      %31 = vector.broadcast %cst_21 : f32 to vector<4x1xf32>
      %32 = arith.mulf %30, %31 : vector<4x1xf32>
      %33 = vector.shape_cast %32 : vector<4x1xf32> to vector<1x4x1xf32>
      %c0_22 = arith.constant 0 : index
      %c0_23 = arith.constant 0 : index
      %c0_24 = arith.constant 0 : index
      %34 = vector.load %arg5[%c0_22, %c0_23, %c0_24] : memref<1x4x1xf32, #tpu.memory_space<vmem>>, vector<1x4x1xf32>
      tpu.vector_store %arg5[%c0_22, %c0_23, %c0_24], %33 {strides = array<i32>} : memref<1x4x1xf32, #tpu.memory_space<vmem>>, vector<1x4x1xf32>,
    } else {
    }
    return
  }
  func.func @transform_0(%arg0: i32, %arg1: i32, %arg2: i32) -> (i32, i32) {
    %c1_i32 = arith.constant 1 : i32
    %0 = arith.muli %arg0, %c1_i32 : i32
    %1 = arith.addi %0, %arg2 : i32
    %c1_i32_0 = arith.constant 1 : i32
    %2 = arith.minsi %1, %c1_i32_0 : i32
    %c0_i32 = arith.constant 0 : i32
    return %arg1, %2 : i32, i32
  }
  func.func @transform_1(%arg0: i32, %arg1: i32, %arg2: i32) -> (i32, i32) {
    %c1_i32 = arith.constant 1 : i32
    %0 = arith.muli %arg0, %c1_i32 : i32
    %1 = arith.addi %0, %arg2 : i32
    %c1_i32_0 = arith.constant 1 : i32
    %2 = arith.minsi %1, %c1_i32_0 : i32
    %c0_i32 = arith.constant 0 : i32
    return %arg1, %2 : i32, i32
  }
  func.func @transform_2(%arg0: i32, %arg1: i32, %arg2: i32) -> (i32, i32, i32) {
    %c0_i32 = arith.constant 0 : i32
    %c0_i32_0 = arith.constant 0 : i32
    return %arg0, %arg1, %c0_i32 : i32, i32, i32
  }
}

</mosaic_0001>

<llo_original>
// kernel: tpu_custom_call.1
$region0: #{tpu_custom_call.1}
  #allocation0 [shape = 'u32[]', space=smem, size = 0x4, offset = 0x4, fixed_abs, tag = 'smem constant byte address 0x4 - core index']
  #allocation1 [shape = 'u32[144,128]{1,0:T(1,128)}', space=vmem, size = 0x12000, scoped, tag = 'internal scratch']
  #allocation2 [shape = 'f32[4,128]{1,0:T(4,128)}', space=vmem, size = 0x800, scoped, tag = 'scratch operand']
  %s0 = inlined_call_operand.hbm [shape: f32[4,1024], index: 0, kind: input, shape index: {}]
  %s1 = inlined_call_operand.hbm [shape: f32[4,1024], index: 1, kind: input, shape index: {}]
  %s2 = inlined_call_operand.vmem [shape: f32[2,4,1], index: 2, kind: output, shape index: {}]
  %s3 = sld [smem:[#allocation0]]
  $region57: #{tpu_custom_call.1} parent=0
    _
  %s5 = ssub.s32 1, %s3
  %s6 = scalar_select 0, %s5, %s3
  $region1: #{tpu_custom_call.1} parent=0
    #allocation3 [shape = 'u8[16384]{0}', space=vmem, size = 0x4000, scoped, tag = 'input window, operand 0']
    #allocation4 [shape = 's32[2]{0}', space=sflag, size = 0x8, scoped, tag = 'scoped memory for tpu_custom_call.1']
    #allocation5 [shape = 'u8[16384]{0}', space=vmem, size = 0x4000, scoped, tag = 'input window, operand 1']
    #allocation6 [shape = 's32[2]{0}', space=sflag, size = 0x8, scoped, tag = 'scoped memory for tpu_custom_call.1']
    %7 = vsyncpa [#allocation4], 0
    %s8 = scalar_lea.sflag [#allocation4], 1
    %9 = vsyncpa %s8, 0
    %10 = vsyncpa [#allocation6], 0
    %s11 = scalar_lea.sflag [#allocation6], 1
    %12 = vsyncpa %s11, 0
    loop: start=0, step=1, limit=4
    $region2: #{tpu_custom_call.1} parent=1 // loop_pre_header
      _
    $region3: #{tpu_custom_call.1} parent=1 // loop_header
      %s14 = sphi 0, %s18
      %p15 = scmp.ge.s32.totalorder %s14, 4
      %s21 = sphi 0, %s40
      %s22 = sphi 0, %s36
      %s23 = sphi 0, %s32
      %s24 = sphi 0, %s21
      %s25 = sphi 0, %s22
      %s26 = sphi 0, %s23
      %s27 = sphi 0, %s24
      %s28 = sphi 0, %s25
      %s29 = sphi 0, %s26
      %s51 = sphi 0, %s53
      %s54 = sphi 0, %s51
      %s55 = sphi 0, %s54
      %s71 = sphi 0, %s55
      %s85 = sphi 0, %s87
      %s88 = sphi 0, %s85
      %s89 = sphi 0, %s88
      %s105 = sphi 0, %s89
      %s113 = sphi 0, %s115
      %s116 = sphi 0, %s113
      %s117 = sphi 0, %s116
      %s133 = sphi 0, %s117
    $region4: #{tpu_custom_call.1} parent=1 // loop_header_branch
      %17 = sbr.rel (%p15) target = $region8
    $region5: #{tpu_custom_call.1} parent=1 // loop_body
      %s19 = ssub.s32 %s14, 1
      %s20 = ssub.s32 %s14, 2
      %s30 = sadd.s32 1, %s23
      %p31 = scmp.ge.s32.totalorder %s30, 1
      %s32 = scalar_select %p31, 0, %s30
      %s33 = sadd.s32 1, %s22
      %s34 = scalar_select %p31, %s33, %s22
      %p35 = scmp.ge.s32.totalorder %s34, 1
      %s36 = scalar_select %p35, 0, %s34
      %s37 = sadd.s32 1, %s21
      %s38 = scalar_select %p35, %s37, %s21
      %p39 = scmp.ge.s32.totalorder %s38, 2
      %s40 = scalar_select %p39, 0, %s38
      %s41 = sadd.s32 %s21, %s23
      %p42 = scmp.lt.s32.totalorder %s41, 1
      %s43 = scalar_select %p42, %s41, 1
      %s44 = sadd.s32 %s40, %s32
      %p45 = scmp.lt.s32.totalorder %s44, 1
      %s46 = scalar_select %p45, %s44, 1
      %s47 = ssub.s32 %s22, %s36
      %s48 = ssub.s32 %s43, %s46
      %s49 = sor.u32 %s47, %s48
      %p50 = scmp.eq.s32.totalorder %s49, 0
      %s52 = sadd.s32 %s51, 1
      %s53 = scalar_select %p50, %s51, %s52
      %p56 = pneg %p50
      %p57 = scmp.eq.s32.totalorder %s14, 1
      %p58 = por %p56, %p57
      %p59 = scmp.ne.s32.totalorder %s51, %s54
      %p60 = scmp.eq.s32.totalorder %s14, 0
      %p61 = por %p59, %p60
      %p62 = scmp.ne.s32.totalorder %s51, %s54
      %p63 = scmp.eq.s32.totalorder %s19, 1
      %p64 = por %p62, %p63
      %p65 = scmp.ne.s32.totalorder %s54, %s55
      %p66 = scmp.eq.s32.totalorder %s19, 0
      %p67 = por %p65, %p66
      %p68 = scmp.ne.s32.totalorder %s54, %s55
      %p69 = scmp.eq.s32.totalorder %s20, 1
      %p70 = por %p68, %p69
      %p72 = scmp.ne.s32.totalorder %s55, %s71
      %p73 = scmp.eq.s32.totalorder %s20, 0
      %p74 = por %p72, %p73
      %s75 = sadd.s32 %s21, %s23
      %p76 = scmp.lt.s32.totalorder %s75, 1
      %s77 = scalar_select %p76, %s75, 1
      %s78 = sadd.s32 %s40, %s32
      %p79 = scmp.lt.s32.totalorder %s78, 1
      %s80 = scalar_select %p79, %s78, 1
      %s81 = ssub.s32 %s22, %s36
      %s82 = ssub.s32 %s77, %s80
      %s83 = sor.u32 %s81, %s82
      %p84 = scmp.eq.s32.totalorder %s83, 0
      %s86 = sadd.s32 %s85, 1
      %s87 = scalar_select %p84, %s85, %s86
      %p90 = pneg %p84
      %p91 = scmp.eq.s32.totalorder %s14, 1
      %p92 = por %p90, %p91
      %p93 = scmp.ne.s32.totalorder %s85, %s88
      %p94 = scmp.eq.s32.totalorder %s14, 0
      %p95 = por %p93, %p94
      %p96 = scmp.ne.s32.totalorder %s85, %s88
      %p97 = scmp.eq.s32.totalorder %s19, 1
      %p98 = por %p96, %p97
      %p99 = scmp.ne.s32.totalorder %s88, %s89
      %p100 = scmp.eq.s32.totalorder %s19, 0
      %p101 = por %p99, %p100
      %p102 = scmp.ne.s32.totalorder %s88, %s89
      %p103 = scmp.eq.s32.totalorder %s20, 1
      %p104 = por %p102, %p103
      %p106 = scmp.ne.s32.totalorder %s89, %s105
      %p107 = scmp.eq.s32.totalorder %s20, 0
      %p108 = por %p106, %p107
      %s109 = ssub.s32 %s21, %s40
      %s110 = ssub.s32 %s22, %s36
      %s111 = sor.u32 %s109, %s110
      %p112 = scmp.eq.s32.totalorder %s111, 0
      %s114 = sadd.s32 %s113, 1
      %s115 = scalar_select %p112, %s113, %s114
      %p118 = pneg %p112
      %p119 = scmp.eq.s32.totalorder %s14, 1
      %p120 = por %p118, %p119
      %p121 = scmp.ne.s32.totalorder %s113, %s116
      %p122 = scmp.eq.s32.totalorder %s14, 0
      %p123 = por %p121, %p122
      %p124 = scmp.ne.s32.totalorder %s113, %s116
      %p125 = scmp.eq.s32.totalorder %s19, 1
      %p126 = por %p124, %p125
      %p127 = scmp.ne.s32.totalorder %s116, %s117
      %p128 = scmp.eq.s32.totalorder %s19, 0
      %p129 = por %p127, %p128
      %p130 = scmp.ne.s32.totalorder %s116, %s117
      %p131 = scmp.eq.s32.totalorder %s20, 1
      %p132 = por %p130, %p131
      %p134 = scmp.ne.s32.totalorder %s117, %s133
      %p135 = scmp.eq.s32.totalorder %s20, 0
      %p136 = por %p134, %p135
      %p137 = scmp.le.s32.totalorder 1, %s14
      %p138 = scmp.lt.s32.totalorder %s14, 3
      %p139 = pnand %p137, %p138
      %p140 = pneg %p139
      // Predicated region
      $region9: #{tpu_custom_call.1} parent=5 // pred_check
        _
      $region10: #{tpu_custom_call.1} parent=5 // pred_check_branch
        %142 = sbr.rel (%p139) target = $region12
      $region11: #{tpu_custom_call.1} parent=5 // pred_region
        %s143 = ssub.s32 %s14, 1
      $region12: #{tpu_custom_call.1} parent=5 // pred_fallthru
        _
      %p144 = scmp.lt.s32.totalorder %s14, 2
      // Predicated region
      $region13: #{tpu_custom_call.1} parent=5 // pred_check
        %p145 = pneg %p144
      $region14: #{tpu_custom_call.1} parent=5 // pred_check_branch
        %147 = sbr.rel (%p145) target = $region16
      $region15: #{tpu_custom_call.1} parent=5 // pred_region
        // Predicated region
        $region17: #{tpu_custom_call.1} parent=15 // pred_check
          %p148 = pneg %p61
        $region18: #{tpu_custom_call.1} parent=15 // pred_check_branch
          %150 = sbr.rel (%p148) target = $region20
        $region19: #{tpu_custom_call.1} parent=15 // pred_region
          %s151 = sand.u32 %s51, 1
          %s152 = scalar_lea.sflag [#allocation4], %s151
          %s153 = sand.u32 %s51, 1
          %s154 = smul.addr %s153, 16
          %s155 = scalar_lea.vmem [#allocation3], %s154
          %s156 = sadd.s32 %s21, %s23
          %p157 = scmp.lt.s32.totalorder %s156, 1
          %s158 = scalar_select %p157, %s156, 1
          %s159 = smul.u32 4, %s158
          %s161 = ssub.s32 256, 256
          %162 = vsyncadd %s152, %s161
          %s163 = smul.addr %s22, 8
          %s164 = sadd.s32 %s159, %s163
          %s165 = smul.addr %s164, 64
          %s166 = scalar_lea.hbm %s0, %s165
          %s168 = sshll.u32 %s155, 4
          %s169 = int_to_ptr.vmem [resolvable:$true] %s168
          %171 = dma.hbm_to_vmem [thread:$0]  %s166, 256, %s169, %s152
        $region20: #{tpu_custom_call.1} parent=15 // pred_fallthru
          _
        // Predicated region
        $region21: #{tpu_custom_call.1} parent=15 // pred_check
          %p172 = pneg %p95
        $region22: #{tpu_custom_call.1} parent=15 // pred_check_branch
          %174 = sbr.rel (%p172) target = $region24
        $region23: #{tpu_custom_call.1} parent=15 // pred_region
          %s175 = sand.u32 %s85, 1
          %s176 = scalar_lea.sflag [#allocation6], %s175
          %s177 = sand.u32 %s85, 1
          %s178 = smul.addr %s177, 16
          %s179 = scalar_lea.vmem [#allocation5], %s178
          %s180 = sadd.s32 %s21, %s23
          %p181 = scmp.lt.s32.totalorder %s180, 1
          %s182 = scalar_select %p181, %s180, 1
          %s183 = smul.u32 4, %s182
          %s185 = ssub.s32 256, 256
          %186 = vsyncadd %s176, %s185
          %s187 = smul.addr %s22, 8
          %s188 = sadd.s32 %s183, %s187
          %s189 = smul.addr %s188, 64
          %s190 = scalar_lea.hbm %s1, %s189
          %s192 = sshll.u32 %s179, 4
          %s193 = int_to_ptr.vmem [resolvable:$true] %s192
          %195 = dma.hbm_to_vmem [thread:$0]  %s190, 256, %s193, %s176
        $region24: #{tpu_custom_call.1} parent=15 // pred_fallthru
          _
      $region16: #{tpu_custom_call.1} parent=5 // pred_fallthru
        _
      %p196 = scmp.le.s32.totalorder 1, %s14
      %p197 = scmp.lt.s32.totalorder %s14, 3
      %p198 = pnand %p196, %p197
      %p199 = pneg %p198
      // Predicated region
      $region25: #{tpu_custom_call.1} parent=5 // pred_check
        _
      $region26: #{tpu_custom_call.1} parent=5 // pred_check_branch
        %201 = sbr.rel (%p198) target = $region28
      $region27: #{tpu_custom_call.1} parent=5 // pred_region
        %s202 = ssub.s32 %s14, 1
        %s203 = sand.u32 %s54, 1
        %s204 = scalar_lea.sflag [#allocation4], %s203
        %s205 = sand.u32 %s54, 1
        %s206 = smul.addr %s205, 16
        %s207 = scalar_lea.vmem [#allocation3], %s206
        // Predicated region
        $region29: #{tpu_custom_call.1} parent=27 // pred_check
          %p208 = pneg %p67
        $region30: #{tpu_custom_call.1} parent=27 // pred_check_branch
          %210 = sbr.rel (%p208) target = $region32
        $region31: #{tpu_custom_call.1} parent=27 // pred_region
          %211 = dma.done %s204, 256
        $region32: #{tpu_custom_call.1} parent=27 // pred_fallthru
          _
        %s212 = sand.u32 %s88, 1
        %s213 = scalar_lea.sflag [#allocation6], %s212
        %s214 = sand.u32 %s88, 1
        %s215 = smul.addr %s214, 16
        %s216 = scalar_lea.vmem [#allocation5], %s215
        // Predicated region
        $region33: #{tpu_custom_call.1} parent=27 // pred_check
          %p217 = pneg %p101
        $region34: #{tpu_custom_call.1} parent=27 // pred_check_branch
          %219 = sbr.rel (%p217) target = $region36
        $region35: #{tpu_custom_call.1} parent=27 // pred_region
          %220 = dma.done %s213, 256
        $region36: #{tpu_custom_call.1} parent=27 // pred_fallthru
          _
        %s221 = sand.u32 %s54, 1
        %s222 = scalar_lea.sflag [#allocation4], %s221
        %s223 = sand.u32 %s54, 1
        %s224 = smul.addr %s223, 16
        %s225 = scalar_lea.vmem [#allocation3], %s224
        %p226 = pneg %p67
        %p227 = pneg %p64
        %s228 = sand.u32 %s88, 1
        %s229 = scalar_lea.sflag [#allocation6], %s228
        %s230 = sand.u32 %s88, 1
        %s231 = smul.addr %s230, 16
        %s232 = scalar_lea.vmem [#allocation5], %s231
        %p233 = pneg %p101
        %p234 = pneg %p98
        %p235 = pneg %p129
        %p236 = pneg %p126
        %p237 = scmp.lt.s32.totalorder %s24, 1
        %s238 = scalar_select %p237, %s24, 1
        %p239 = scmp.lt.s32.totalorder %s25, 0
        %s240 = scalar_select %p239, %s25, 0
        %s241 = sadd.s32 %s240, %s238
        %s242 = smul.addr %s241, 4
        %s243 = scalar_lea.vmem %s2, %s242
        %s244 = sadd.s32 %s24, %s26
        %p245 = scmp.lt.s32.totalorder %s244, 1
        %s246 = scalar_select %p245, %s244, 1
        %s247 = smul.u32 4, %s246
        %s248 = sadd.s32 %s24, %s26
        %p249 = scmp.lt.s32.totalorder %s248, 1
        %s250 = scalar_select %p249, %s248, 1
        %s251 = smul.u32 4, %s250
        %p252 = scmp.lt.s32.totalorder %s24, 1
        %s253 = scalar_select %p252, %s24, 1
        %p254 = scmp.lt.s32.totalorder %s25, 0
        %s255 = scalar_select %p254, %s25, 0
        %s256 = sadd.s32 %s255, %s253
        %s257 = smul.addr %s256, 4
        %s258 = scalar_lea.vmem %s2, %s257
        %p259 = scmp.eq.s32.totalorder %s26, 0
        // Predicated region
        $region37: #{tpu_custom_call.1} parent=27 // pred_check
          %p260 = pneg %p259
        $region38: #{tpu_custom_call.1} parent=27 // pred_check_branch
          %262 = sbr.rel (%p260) target = $region40
        $region39: #{tpu_custom_call.1} parent=27 // pred_region
          %263 = vst [vmem:[#allocation2] sm:$0xf] 0.0
        $region40: #{tpu_custom_call.1} parent=27 // pred_fallthru
          _
        %v264 = vld [vmem:[%s216] sm:$0xf]
        %v265 = vld [vmem:[%s207] sm:$0xf]
        %v266 = vsub.f32 %v265, %v264
        %v267 = vmul.f32 %v266, %v266
        %v268 = vld [vmem:[%s216 + $0x4] sm:$0xf]
        %v269 = vld [vmem:[%s207 + $0x4] sm:$0xf]
        %v270 = vsub.f32 %v269, %v268
        %v271 = vmul.f32 %v270, %v270
        %v272 = vld [vmem:[%s216 + $0x8] sm:$0xf]
        %v273 = vld [vmem:[%s207 + $0x8] sm:$0xf]
        %v274 = vsub.f32 %v273, %v272
        %v275 = vmul.f32 %v274, %v274
        %v276 = vld [vmem:[%s216 + $0xc] sm:$0xf]
        %v277 = vld [vmem:[%s207 + $0xc] sm:$0xf]
        %v278 = vsub.f32 %v277, %v276
        %v279 = vmul.f32 %v278, %v278
        %v280 = vadd.f32 %v267, %v271
        %v281 = vadd.f32 %v280, %v275
        %v282 = vadd.f32 %v281, %v279
        %v283 = vld [vmem:[#allocation2] sm:$0xf]
        %v284 = vadd.f32 %v283, %v282
        %285 = vst [vmem:[#allocation2] sm:$0xf] %v284
        // Predicated region
        $region41: #{tpu_custom_call.1} parent=27 // pred_check
          %p286 = pneg %p259
        $region42: #{tpu_custom_call.1} parent=27 // pred_check_branch
          %288 = sbr.rel (%p286) target = $region44
        $region43: #{tpu_custom_call.1} parent=27 // pred_region
          %v289 = vld [vmem:[#allocation2] sm:$0xf]
          %vm290 = vcmask 1043456
          %v291 = vsel %vm290, %v289, 0.0
          %292 = vadd.xlane.f32.xlu0 %v291
          %v293 = vpop.xlane.xlu0 %292
          %v294 = vmul.f32 %v293, 0.0009765625
          %vm295 = vcmask 3072
          %296 = vst.msk [vmem:[%s258] sm:$0xf] %vm295, %v294
        $region44: #{tpu_custom_call.1} parent=27 // pred_fallthru
          _
        %p297 = scmp.lt.s32.totalorder %s24, 1
        %s298 = scalar_select %p297, %s24, 1
        %p299 = scmp.lt.s32.totalorder %s25, 0
        %s300 = scalar_select %p299, %s25, 0
        %s301 = sadd.s32 %s300, %s298
        %s302 = smul.addr %s301, 4
        %s303 = scalar_lea.vmem %s2, %s302
        // Predicated region
        $region45: #{tpu_custom_call.1} parent=27 // pred_check
          %p304 = pneg %p126
        $region46: #{tpu_custom_call.1} parent=27 // pred_check_branch
          %306 = sbr.rel (%p304) target = $region48
        $region47: #{tpu_custom_call.1} parent=27 // pred_region
          _
        $region48: #{tpu_custom_call.1} parent=27 // pred_fallthru
          _
      $region28: #{tpu_custom_call.1} parent=5 // pred_fallthru
        _
      %p307 = scmp.le.s32.totalorder 2, %s14
      // Predicated region
      $region49: #{tpu_custom_call.1} parent=5 // pred_check
        %p308 = pneg %p307
      $region50: #{tpu_custom_call.1} parent=5 // pred_check_branch
        %310 = sbr.rel (%p308) target = $region52
      $region51: #{tpu_custom_call.1} parent=5 // pred_region
        %s311 = ssub.s32 %s14, 2
        // Predicated region
        $region53: #{tpu_custom_call.1} parent=51 // pred_check
          %p312 = pneg %p132
        $region54: #{tpu_custom_call.1} parent=51 // pred_check_branch
          %314 = sbr.rel (%p312) target = $region56
        $region55: #{tpu_custom_call.1} parent=51 // pred_region
          %p315 = scmp.lt.s32.totalorder %s27, 1
          %s316 = scalar_select %p315, %s27, 1
          %p317 = scmp.lt.s32.totalorder %s28, 0
          %s318 = scalar_select %p317, %s28, 0
          %s319 = sadd.s32 %s318, %s316
          %s320 = smul.addr %s319, 4
          %s321 = scalar_lea.vmem %s2, %s320
        $region56: #{tpu_custom_call.1} parent=51 // pred_fallthru
          _
      $region52: #{tpu_custom_call.1} parent=5 // pred_fallthru
        _
    $region6: #{tpu_custom_call.1} parent=1 // loop_footer
      %s18 = sadd.s32 1, %s14
    $region7: #{tpu_custom_call.1} parent=1 // loop_footer_branch
      %13 = sbr.rel target = $region3
    $region8: #{tpu_custom_call.1} parent=1 // loop_exit
      _
    %322 = vsyncpa [#allocation4], 1
    %s323 = scalar_lea.sflag [#allocation4], 1
    %324 = vsyncpa %s323, 1
    %325 = vsyncpa [#allocation6], 1
    %s326 = scalar_lea.sflag [#allocation6], 1
    %327 = vsyncpa %s326, 1

</llo_original>
